<compile_context>
chip_gen: v7x
topology: tpu7x:2x2x1
jax: 0.10.0
libtpu: 0.0.40
codegen_flags: <defaults>
</compile_context>

<pallas_src>
import functools
import math

import jax
import jax.numpy as jnp
from jax.experimental import pallas as pl
from jax.experimental.pallas import tpu as pltpu

_LANE = 128        # vreg lane width  -> feature dims padded to multiples of 128
_SUBLANE = 8       # vreg sublane     -> batch padded to multiples of 8
_BATCH_TILE = 256  # batch block when batch is large (grid -> megacore parallel)


def _round_up(x: int, m: int) -> int:
    return ((x + m - 1) // m) * m


def _mlp_kernel(*refs, relu_flags, n_layers):
    """Fused MLP: all layers in one kernel; activations stay in vregs/VMEM.

    refs = (x_ref, w0_ref, b0_ref, w1_ref, b1_ref, ..., o_ref)
      x: [Bt, IN_pad], w_l: [IN_pad_l, OUT_pad_l], b_l: [1, OUT_pad_l]
    """
    x_ref = refs[0]
    o_ref = refs[-1]
    h = x_ref[...]
    for l in range(n_layers):
        w_ref = refs[1 + 2 * l]
        b_ref = refs[2 + 2 * l]
        y = jnp.dot(h, w_ref[...], preferred_element_type=jnp.float32)
        y = y + b_ref[...]                      # bias rides free in VPU slots
        if relu_flags[l]:
            # torch.nn.LeakyReLU default negative_slope = 0.01
            y = jnp.where(y >= 0, y, jnp.float32(0.01) * y)
        h = y
    o_ref[...] = h.astype(o_ref.dtype)


@functools.partial(jax.jit, static_argnames=("relu_flags", "out_real"))
def _mlp_forward(x, flat_params, relu_flags, out_real):
    """Pad -> single fused Pallas kernel -> un-pad slice."""
    n_layers = len(flat_params) // 2
    B, in_real = x.shape
    in_pad = flat_params[0].shape[0]
    out_pad = flat_params[-2].shape[1]

    kernel = functools.partial(_mlp_kernel, relu_flags=relu_flags,
                               n_layers=n_layers)

    if B <= _BATCH_TILE:
        # Single invocation, whole arrays in VMEM, no pipeline machinery.
        b_pad = _round_up(B, _SUBLANE)
        x_p = jnp.zeros((b_pad, in_pad), jnp.float32)
        x_p = x_p.at[:B, :in_real].set(x.astype(jnp.float32))
        out_p = pl.pallas_call(
            kernel,
            out_shape=jax.ShapeDtypeStruct((b_pad, out_pad), jnp.float32),
        )(x_p, *flat_params)
    else:
        # Batch-tiled grid; "parallel" lets v7x shard blocks across its 2 TCs
        # (harmless serial loop on v5e/v6e), and bounds VMEM at large batch.
        b_pad = _round_up(B, _BATCH_TILE)
        n_blocks = b_pad // _BATCH_TILE
        x_p = jnp.zeros((b_pad, in_pad), jnp.float32)
        x_p = x_p.at[:B, :in_real].set(x.astype(jnp.float32))

        in_specs = [pl.BlockSpec((_BATCH_TILE, in_pad), lambda i: (i, 0))]
        for l in range(n_layers):
            w = flat_params[2 * l]
            b = flat_params[2 * l + 1]
            in_specs.append(pl.BlockSpec(w.shape, lambda i: (0, 0)))
            in_specs.append(pl.BlockSpec(b.shape, lambda i: (0, 0)))

        out_p = pl.pallas_call(
            kernel,
            out_shape=jax.ShapeDtypeStruct((b_pad, out_pad), jnp.float32),
            grid=(n_blocks,),
            in_specs=in_specs,
            out_specs=pl.BlockSpec((_BATCH_TILE, out_pad), lambda i: (i, 0)),
            compiler_params=pltpu.CompilerParams(
                dimension_semantics=("parallel",)),
        )(x_p, *flat_params)

    return out_p[:B, :out_real]


class MLP:
    """JAX/Pallas equivalent of the PyTorch MLP (duelingDQN.py).

    Architecture (matching the torch code exactly):
      Linear(input, h[0]) -> LeakyReLU ->
      for i in range(len(h)-1): Linear(h[i], h[i+1]) (+ LeakyReLU except the
      last layer unless last_relu=True).
    """

    def __init__(self, input_layer_size: int, hidden_layers: list,
                 last_relu: bool = False, key=None):
        if key is None:
            key = jax.random.PRNGKey(0)
        dims = [input_layer_size] + list(hidden_layers)
        n_h = len(hidden_layers)

        relu_flags = [True]                       # first Linear always has LeakyReLU
        for i in range(n_h - 1):
            if i != n_h - 2:
                relu_flags.append(True)
            elif last_relu:
                relu_flags.append(True)
            else:
                relu_flags.append(False)
        self.relu_flags = tuple(relu_flags)

        # Weights stored as [in, out] (transpose of torch's [out, in]) so the
        # kernel computes y = x @ W + b directly on the MXU.  Padded copies
        # (multiples of 128 on both dims, zeros elsewhere) feed the kernel.
        self.params_real = []       # unpadded, for the pure-JAX reference
        flat_padded = []
        for i in range(n_h):
            fan_in, fan_out = dims[i], dims[i + 1]
            key, kw, kb = jax.random.split(key, 3)
            # torch.nn.Linear default init: U(-1/sqrt(fan_in), 1/sqrt(fan_in))
            bound = 1.0 / math.sqrt(fan_in)
            w = jax.random.uniform(kw, (fan_in, fan_out), jnp.float32,
                                   -bound, bound)
            b = jax.random.uniform(kb, (fan_out,), jnp.float32, -bound, bound)
            self.params_real.append((w, b))

            in_pad = _round_up(fan_in, _LANE)
            out_pad = _round_up(fan_out, _LANE)
            w_pad = jnp.zeros((in_pad, out_pad), jnp.float32)
            w_pad = w_pad.at[:fan_in, :fan_out].set(w)
            b_pad = jnp.zeros((1, out_pad), jnp.float32)
            b_pad = b_pad.at[0, :fan_out].set(b)
            flat_padded += [w_pad, b_pad]

        self.flat_params = tuple(flat_padded)
        self.out_real = dims[-1]

    def __call__(self, x):
        return _mlp_forward(x, self.flat_params,
                            relu_flags=self.relu_flags,
                            out_real=self.out_real)


def _reference_forward(mlp: MLP, x):
    # Pure-JAX reference for correctness checking (unpadded params).
    h = x
    for (w, b), relu in zip(mlp.params_real, mlp.relu_flags):
        h = h @ w + b
        if relu:
            h = jnp.where(h >= 0, h, 0.01 * h)
    return h


if __name__ == "__main__":
    key = jax.random.PRNGKey(0)
    key, kx1, kx2, kmodel = jax.random.split(key, 4)

    input_size = 32
    hidden_layers = [64, 64, 4]   # e.g. dueling-DQN head sizes

    mlp = MLP(input_size, hidden_layers, last_relu=False, key=kmodel)

    # Small batch: single fused kernel invocation (no grid).
    x_small = jax.random.normal(kx1, (8, input_size), dtype=jnp.float32)
    out_small = jax.block_until_ready(mlp(x_small))
    ref_small = _reference_forward(mlp, x_small)
    assert out_small.shape == (8, hidden_layers[-1])
    assert jnp.allclose(out_small, ref_small, atol=1e-4, rtol=1e-4), \
        "small-batch mismatch vs reference"

    # Larger, non-aligned batch: exercises the batch-tiled ("parallel") path.
    x_big = jax.random.normal(kx2, (600, input_size), dtype=jnp.float32)
    out_big = jax.block_until_ready(mlp(x_big))
    ref_big = _reference_forward(mlp, x_big)
    assert out_big.shape == (600, hidden_layers[-1])
    assert jnp.allclose(out_big, ref_big, atol=1e-4, rtol=1e-4), \
        "batch-tiled mismatch vs reference"

    print("KERNEL_OK")
</pallas_src>

<mosaic_0001>
module attributes {stable_mosaic.version = 11 : i64} {
  func.func @_mlp_kernel(%arg0: memref<8x128xf32, #tpu.memory_space<vmem>>, %arg1: memref<128x128xf32, #tpu.memory_space<vmem>>, %arg2: memref<1x128xf32, #tpu.memory_space<vmem>>, %arg3: memref<128x128xf32, #tpu.memory_space<vmem>>, %arg4: memref<1x128xf32, #tpu.memory_space<vmem>>, %arg5: memref<128x128xf32, #tpu.memory_space<vmem>>, %arg6: memref<1x128xf32, #tpu.memory_space<vmem>>, %arg7: memref<8x128xf32, #tpu.memory_space<vmem>>) attributes {dimension_semantics = [], scalar_prefetch = 0 : i64, scratch_operands = 0 : i64, tpu.core_type = #tpu.core_type<tc>} {
    %c0 = arith.constant 0 : index
    %c0_0 = arith.constant 0 : index
    %0 = vector.load %arg0[%c0, %c0_0] : memref<8x128xf32, #tpu.memory_space<vmem>>, vector<8x128xf32>
    %c0_1 = arith.constant 0 : index
    %c0_2 = arith.constant 0 : index
    %1 = vector.load %arg1[%c0_1, %c0_2] : memref<128x128xf32, #tpu.memory_space<vmem>>, vector<128x128xf32>
    %cst = arith.constant dense<0.000000e+00> : vector<8x128xf32>
    %2 = tpu.matmul %0, %1, %cst {dimension_numbers = #tpu.dot_dimension_numbers<[1], [0], [0], [1], [0, 0, 1, 1], [], []>} : vector<8x128xf32>, vector<128x128xf32>, vector<8x128xf32> -> vector<8x128xf32>
    %c0_3 = arith.constant 0 : index
    %c0_4 = arith.constant 0 : index
    %3 = vector.load %arg2[%c0_3, %c0_4] : memref<1x128xf32, #tpu.memory_space<vmem>>, vector<1x128xf32>
    %4 = vector.broadcast %3 : vector<1x128xf32> to vector<8x128xf32>
    %5 = arith.addf %2, %4 : vector<8x128xf32>
    %cst_5 = arith.constant 0.000000e+00 : f32
    %6 = vector.broadcast %cst_5 : f32 to vector<8x128xf32>
    %7 = arith.cmpf oge, %5, %6 : vector<8x128xf32>
    %cst_6 = arith.constant 0.00999999977 : f32
    %8 = vector.broadcast %cst_6 : f32 to vector<8x128xf32>
    %9 = arith.mulf %8, %5 : vector<8x128xf32>
    %10 = arith.select %7, %5, %9 : vector<8x128xi1>, vector<8x128xf32>
    %c0_7 = arith.constant 0 : index
    %c0_8 = arith.constant 0 : index
    %11 = vector.load %arg3[%c0_7, %c0_8] : memref<128x128xf32, #tpu.memory_space<vmem>>, vector<128x128xf32>
    %cst_9 = arith.constant dense<0.000000e+00> : vector<8x128xf32>
    %12 = tpu.matmul %10, %11, %cst_9 {dimension_numbers = #tpu.dot_dimension_numbers<[1], [0], [0], [1], [0, 0, 1, 1], [], []>} : vector<8x128xf32>, vector<128x128xf32>, vector<8x128xf32> -> vector<8x128xf32>
    %c0_10 = arith.constant 0 : index
    %c0_11 = arith.constant 0 : index
    %13 = vector.load %arg4[%c0_10, %c0_11] : memref<1x128xf32, #tpu.memory_space<vmem>>, vector<1x128xf32>
    %14 = vector.broadcast %13 : vector<1x128xf32> to vector<8x128xf32>
    %15 = arith.addf %12, %14 : vector<8x128xf32>
    %cst_12 = arith.constant 0.000000e+00 : f32
    %16 = vector.broadcast %cst_12 : f32 to vector<8x128xf32>
    %17 = arith.cmpf oge, %15, %16 : vector<8x128xf32>
    %cst_13 = arith.constant 0.00999999977 : f32
    %18 = vector.broadcast %cst_13 : f32 to vector<8x128xf32>
    %19 = arith.mulf %18, %15 : vector<8x128xf32>
    %20 = arith.select %17, %15, %19 : vector<8x128xi1>, vector<8x128xf32>
    %c0_14 = arith.constant 0 : index
    %c0_15 = arith.constant 0 : index
    %21 = vector.load %arg5[%c0_14, %c0_15] : memref<128x128xf32, #tpu.memory_space<vmem>>, vector<128x128xf32>
    %cst_16 = arith.constant dense<0.000000e+00> : vector<8x128xf32>
    %22 = tpu.matmul %20, %21, %cst_16 {dimension_numbers = #tpu.dot_dimension_numbers<[1], [0], [0], [1], [0, 0, 1, 1], [], []>} : vector<8x128xf32>, vector<128x128xf32>, vector<8x128xf32> -> vector<8x128xf32>
    %c0_17 = arith.constant 0 : index
    %c0_18 = arith.constant 0 : index
    %23 = vector.load %arg6[%c0_17, %c0_18] : memref<1x128xf32, #tpu.memory_space<vmem>>, vector<1x128xf32>
    %24 = vector.broadcast %23 : vector<1x128xf32> to vector<8x128xf32>
    %25 = arith.addf %22, %24 : vector<8x128xf32>
    %c0_19 = arith.constant 0 : index
    %c0_20 = arith.constant 0 : index
    %26 = vector.load %arg7[%c0_19, %c0_20] : memref<8x128xf32, #tpu.memory_space<vmem>>, vector<8x128xf32>
    tpu.vector_store %arg7[%c0_19, %c0_20], %25 {strides = array<i32>} : memref<8x128xf32, #tpu.memory_space<vmem>>, vector<8x128xf32>,
    return
  }
}

</mosaic_0001>

<llo_original>
// kernel: _mlp_forward.1
$region0: #{_mlp_forward.1}
  #allocation0 [shape = 'u32[]', space=smem, size = 0x4, offset = 0x4, fixed_abs, tag = 'smem constant byte address 0x4 - core index']
  #allocation1 [shape = 'u32[144,128]{1,0:T(1,128)}', space=vmem, size = 0x12000, scoped, tag = 'internal scratch']
  %s0 = inlined_call_operand.vmem [shape: f32[8,128], index: 0, kind: input, shape index: {}]
  %s1 = inlined_call_operand.hbm [shape: f32[128,128], index: 1, kind: input, shape index: {}]
  %s2 = inlined_call_operand.vmem [shape: f32[1,128], index: 2, kind: input, shape index: {}]
  %s3 = inlined_call_operand.hbm [shape: f32[128,128], index: 3, kind: input, shape index: {}]
  %s4 = inlined_call_operand.vmem [shape: f32[1,128], index: 4, kind: input, shape index: {}]
  %s5 = inlined_call_operand.hbm [shape: f32[128,128], index: 5, kind: input, shape index: {}]
  %s6 = inlined_call_operand.vmem [shape: f32[1,128], index: 6, kind: input, shape index: {}]
  %s7 = inlined_call_operand.vmem [shape: f32[8,128], index: 7, kind: output, shape index: {}]
  %s8 = sld [smem:[#allocation0]]
  $region50: #{_mlp_forward.1} parent=0
    _
  %s10 = ssub.s32 1, %s8
  %s11 = scalar_select 0, %s10, %s8
  $region1: #{_mlp_forward.1} parent=0
    #allocation2 [shape = 'u8[65536]{0}', space=vmem, size = 0x10000, scoped, tag = 'input window, operand 1, single buffered']
    #allocation3 [shape = 's32[1]{0}', space=sflag, size = 0x4, scoped, tag = 'scoped memory for _mlp_forward.1']
    #allocation4 [shape = 'u8[65536]{0}', space=vmem, size = 0x10000, scoped, tag = 'input window, operand 3, single buffered']
    #allocation5 [shape = 's32[1]{0}', space=sflag, size = 0x4, scoped, tag = 'scoped memory for _mlp_forward.1']
    #allocation6 [shape = 'u8[65536]{0}', space=vmem, size = 0x10000, scoped, tag = 'input window, operand 5, single buffered']
    %12 = vsyncpa [#allocation3], 0
    %13 = vsyncpa [#allocation5], 0
    // Predicated region
    $region2: #{_mlp_forward.1} parent=1 // pred_check
      _
    $region3: #{_mlp_forward.1} parent=1 // pred_check_branch
      %15 = sbr.rel (0) target = $region5
    $region4: #{_mlp_forward.1} parent=1 // pred_region
      _
    $region5: #{_mlp_forward.1} parent=1 // pred_fallthru
      _
    // Predicated region
    $region6: #{_mlp_forward.1} parent=1 // pred_check
      _
    $region7: #{_mlp_forward.1} parent=1 // pred_check_branch
      %17 = sbr.rel (0) target = $region9
    $region8: #{_mlp_forward.1} parent=1 // pred_region
      %s19 = ssub.s32 2048, 2048
      %20 = vsyncadd [#allocation3], %s19
      %s21 = sshll.u32 [#allocation2], 4
      %s22 = int_to_ptr.vmem [resolvable:$true] %s21
      %27 = dma.hbm_to_vmem [thread:$0]  %s1, 2048, %s22, [#allocation3], 128, 128, 8
    $region9: #{_mlp_forward.1} parent=1 // pred_fallthru
      _
    // Predicated region
    $region10: #{_mlp_forward.1} parent=1 // pred_check
      _
    $region11: #{_mlp_forward.1} parent=1 // pred_check_branch
      %29 = sbr.rel (0) target = $region13
    $region12: #{_mlp_forward.1} parent=1 // pred_region
      _
    $region13: #{_mlp_forward.1} parent=1 // pred_fallthru
      _
    // Predicated region
    $region14: #{_mlp_forward.1} parent=1 // pred_check
      _
    $region15: #{_mlp_forward.1} parent=1 // pred_check_branch
      %31 = sbr.rel (0) target = $region17
    $region16: #{_mlp_forward.1} parent=1 // pred_region
      %s33 = ssub.s32 2048, 2048
      %34 = vsyncadd [#allocation5], %s33
      %s35 = sshll.u32 [#allocation4], 4
      %s36 = int_to_ptr.vmem [resolvable:$true] %s35
      %41 = dma.hbm_to_vmem [thread:$0]  %s3, 2048, %s36, [#allocation5], 128, 128, 8
    $region17: #{_mlp_forward.1} parent=1 // pred_fallthru
      _
    // Predicated region
    $region18: #{_mlp_forward.1} parent=1 // pred_check
      _
    $region19: #{_mlp_forward.1} parent=1 // pred_check_branch
      %43 = sbr.rel (0) target = $region21
    $region20: #{_mlp_forward.1} parent=1 // pred_region
      _
    $region21: #{_mlp_forward.1} parent=1 // pred_fallthru
      _
    // Predicated region
    $region22: #{_mlp_forward.1} parent=1 // pred_check
      _
    $region23: #{_mlp_forward.1} parent=1 // pred_check_branch
      %45 = sbr.rel (0) target = $region25
    $region24: #{_mlp_forward.1} parent=1 // pred_region
      %s47 = ssub.s32 2048, 2048
      %48 = vsyncadd [#allocation5], %s47
      %s49 = sshll.u32 [#allocation6], 4
      %s50 = int_to_ptr.vmem [resolvable:$true] %s49
      %55 = dma.hbm_to_vmem [thread:$0]  %s5, 2048, %s50, [#allocation5], 128, 128, 8
    $region25: #{_mlp_forward.1} parent=1 // pred_fallthru
      _
    // Predicated region
    $region26: #{_mlp_forward.1} parent=1 // pred_check
      _
    $region27: #{_mlp_forward.1} parent=1 // pred_check_branch
      %57 = sbr.rel (0) target = $region29
    $region28: #{_mlp_forward.1} parent=1 // pred_region
      _
    $region29: #{_mlp_forward.1} parent=1 // pred_fallthru
      _
    // Predicated region
    $region30: #{_mlp_forward.1} parent=1 // pred_check
      _
    $region31: #{_mlp_forward.1} parent=1 // pred_check_branch
      %59 = sbr.rel (0) target = $region33
    $region32: #{_mlp_forward.1} parent=1 // pred_region
      %60 = dma.done [#allocation3], 2048
    $region33: #{_mlp_forward.1} parent=1 // pred_fallthru
      _
    // Predicated region
    $region34: #{_mlp_forward.1} parent=1 // pred_check
      _
    $region35: #{_mlp_forward.1} parent=1 // pred_check_branch
      %62 = sbr.rel (0) target = $region37
    $region36: #{_mlp_forward.1} parent=1 // pred_region
      %63 = dma.done [#allocation5], 2048
    $region37: #{_mlp_forward.1} parent=1 // pred_fallthru
      _
    // Predicated region
    $region38: #{_mlp_forward.1} parent=1 // pred_check
      _
    $region39: #{_mlp_forward.1} parent=1 // pred_check_branch
      %65 = sbr.rel (0) target = $region41
    $region40: #{_mlp_forward.1} parent=1 // pred_region
      %66 = dma.done [#allocation5], 2048
    $region41: #{_mlp_forward.1} parent=1 // pred_fallthru
      _
    %v67 = vld [vmem:[%s0] sm:$0xff]
    %v68 = vld [vmem:[#allocation2] sm:$0xff]
    %v69 = vld [vmem:[#allocation2 + $0x8] sm:$0xff]
    %v70 = vld [vmem:[#allocation2 + $0x10] sm:$0xff]
    %v71 = vld [vmem:[#allocation2 + $0x18] sm:$0xff]
    %v72 = vld [vmem:[#allocation2 + $0x20] sm:$0xff]
    %v73 = vld [vmem:[#allocation2 + $0x28] sm:$0xff]
    %v74 = vld [vmem:[#allocation2 + $0x30] sm:$0xff]
    %v75 = vld [vmem:[#allocation2 + $0x38] sm:$0xff]
    %v76 = vld [vmem:[#allocation2 + $0x40] sm:$0xff]
    %v77 = vld [vmem:[#allocation2 + $0x48] sm:$0xff]
    %v78 = vld [vmem:[#allocation2 + $0x50] sm:$0xff]
    %v79 = vld [vmem:[#allocation2 + $0x58] sm:$0xff]
    %v80 = vld [vmem:[#allocation2 + $0x60] sm:$0xff]
    %v81 = vld [vmem:[#allocation2 + $0x68] sm:$0xff]
    %v82 = vld [vmem:[#allocation2 + $0x70] sm:$0xff]
    %v83 = vld [vmem:[#allocation2 + $0x78] sm:$0xff]
    %v84 = vld [vmem:[%s2] sm:$0x1]
    %v86 = vlaneseq
    %v87 = vshrl.u32 %v86, 7
    %v88 = vsub.s32 0, %v87
    %v89 = vrot.slane %v84, %v88
    %91 = vmatprep.subr.mxu0 0.0
    %92 = vmatpush1.msra.mxu0 %v68
    %93 = vmatprep.subr.mxu0 0.0
    %94 = vmatpush1.msra.mxu0 %v69
    %95 = vmatprep.subr.mxu0 0.0
    %96 = vmatpush1.msra.mxu0 %v70
    %97 = vmatprep.subr.mxu0 0.0
    %98 = vmatpush1.msra.mxu0 %v71
    %99 = vmatprep.subr.mxu0 0.0
    %100 = vmatpush1.msra.mxu0 %v72
    %101 = vmatprep.subr.mxu0 0.0
    %102 = vmatpush1.msra.mxu0 %v73
    %103 = vmatprep.subr.mxu0 0.0
    %104 = vmatpush1.msra.mxu0 %v74
    %105 = vmatprep.subr.mxu0 0.0
    %106 = vmatpush1.msra.mxu0 %v75
    %107 = vmatprep.subr.mxu0 0.0
    %108 = vmatpush1.msra.mxu0 %v76
    %109 = vmatprep.subr.mxu0 0.0
    %110 = vmatpush1.msra.mxu0 %v77
    %111 = vmatprep.subr.mxu0 0.0
    %112 = vmatpush1.msra.mxu0 %v78
    %113 = vmatprep.subr.mxu0 0.0
    %114 = vmatpush1.msra.mxu0 %v79
    %115 = vmatprep.subr.mxu0 0.0
    %116 = vmatpush1.msra.mxu0 %v80
    %117 = vmatprep.subr.mxu0 0.0
    %118 = vmatpush1.msra.mxu0 %v81
    %119 = vmatprep.subr.mxu0 0.0
    %120 = vmatpush1.msra.mxu0 %v82
    %121 = vmatprep.subr.mxu0 0.0
    %122 = vmatpush1.msra.mxu0 %v83
    %123 = vmatprep.subr.mxu0 0.0
    %124 = vmatpush1.msra.mxu0 0.0
    %125 = vmatprep.subr.mxu0 0.0
    %126 = vmatpush1.msra.mxu0 0.0
    %127 = vmatprep.subr.mxu0 0.0
    %128 = vmatpush1.msra.mxu0 0.0
    %129 = vmatprep.subr.mxu0 0.0
    %130 = vmatpush1.msra.mxu0 0.0
    %131 = vmatprep.subr.mxu0 0.0
    %132 = vmatpush1.msra.mxu0 0.0
    %133 = vmatprep.subr.mxu0 0.0
    %134 = vmatpush1.msra.mxu0 0.0
    %135 = vmatprep.subr.mxu0 0.0
    %136 = vmatpush1.msra.mxu0 0.0
    %137 = vmatprep.subr.mxu0 0.0
    %138 = vmatpush1.msra.mxu0 0.0
    %139 = vmatprep.subr.mxu0 0.0
    %140 = vmatpush1.msra.mxu0 0.0
    %141 = vmatprep.subr.mxu0 0.0
    %142 = vmatpush1.msra.mxu0 0.0
    %143 = vmatprep.subr.mxu0 0.0
    %144 = vmatpush1.msra.mxu0 0.0
    %145 = vmatprep.subr.mxu0 0.0
    %146 = vmatpush1.msra.mxu0 0.0
    %147 = vmatprep.subr.mxu0 0.0
    %148 = vmatpush1.msra.mxu0 0.0
    %149 = vmatprep.subr.mxu0 0.0
    %150 = vmatpush1.msra.mxu0 0.0
    %151 = vmatprep.subr.mxu0 0.0
    %152 = vmatpush1.msra.mxu0 0.0
    %153 = vmatprep.subr.mxu0 0.0
    %154 = vmatpush1.msra.mxu0 0.0
    %155 = vmatprep.mubr.f32.mxu0 0.0
    %156 = vmatmul.mubr.f32.gmra.mrb[0].mxu0 %v67
    %v157 = vpop.f32.mrb[0].mxu0
    %v158 = vadd.f32 %v89, %v157
    %v159 = vpop.f32.mrb[0].mxu0
    %160 = vdwg.mxu0
    %vm161 = vcmp.ge.f32.partialorder %v158, 0.0
    %v162 = vmul.f32 %v158, 0.01
    %v163 = vsel %vm161, %v158, %v162
    %v164 = vld [vmem:[#allocation4] sm:$0xff]
    %v165 = vld [vmem:[#allocation4 + $0x8] sm:$0xff]
    %v166 = vld [vmem:[#allocation4 + $0x10] sm:$0xff]
    %v167 = vld [vmem:[#allocation4 + $0x18] sm:$0xff]
    %v168 = vld [vmem:[#allocation4 + $0x20] sm:$0xff]
    %v169 = vld [vmem:[#allocation4 + $0x28] sm:$0xff]
    %v170 = vld [vmem:[#allocation4 + $0x30] sm:$0xff]
    %v171 = vld [vmem:[#allocation4 + $0x38] sm:$0xff]
    %v172 = vld [vmem:[#allocation4 + $0x40] sm:$0xff]
    %v173 = vld [vmem:[#allocation4 + $0x48] sm:$0xff]
    %v174 = vld [vmem:[#allocation4 + $0x50] sm:$0xff]
    %v175 = vld [vmem:[#allocation4 + $0x58] sm:$0xff]
    %v176 = vld [vmem:[#allocation4 + $0x60] sm:$0xff]
    %v177 = vld [vmem:[#allocation4 + $0x68] sm:$0xff]
    %v178 = vld [vmem:[#allocation4 + $0x70] sm:$0xff]
    %v179 = vld [vmem:[#allocation4 + $0x78] sm:$0xff]
    %v180 = vld [vmem:[%s4] sm:$0x1]
    %v182 = vlaneseq
    %v183 = vshrl.u32 %v182, 7
    %v184 = vsub.s32 0, %v183
    %v185 = vrot.slane %v180, %v184
    %187 = vmatprep.subr.mxu0 0.0
    %188 = vmatpush1.msra.mxu0 %v164
    %189 = vmatprep.subr.mxu0 0.0
    %190 = vmatpush1.msra.mxu0 %v165
    %191 = vmatprep.subr.mxu0 0.0
    %192 = vmatpush1.msra.mxu0 %v166
    %193 = vmatprep.subr.mxu0 0.0
    %194 = vmatpush1.msra.mxu0 %v167
    %195 = vmatprep.subr.mxu0 0.0
    %196 = vmatpush1.msra.mxu0 %v168
    %197 = vmatprep.subr.mxu0 0.0
    %198 = vmatpush1.msra.mxu0 %v169
    %199 = vmatprep.subr.mxu0 0.0
    %200 = vmatpush1.msra.mxu0 %v170
    %201 = vmatprep.subr.mxu0 0.0
    %202 = vmatpush1.msra.mxu0 %v171
    %203 = vmatprep.subr.mxu0 0.0
    %204 = vmatpush1.msra.mxu0 %v172
    %205 = vmatprep.subr.mxu0 0.0
    %206 = vmatpush1.msra.mxu0 %v173
    %207 = vmatprep.subr.mxu0 0.0
    %208 = vmatpush1.msra.mxu0 %v174
    %209 = vmatprep.subr.mxu0 0.0
    %210 = vmatpush1.msra.mxu0 %v175
    %211 = vmatprep.subr.mxu0 0.0
    %212 = vmatpush1.msra.mxu0 %v176
    %213 = vmatprep.subr.mxu0 0.0
    %214 = vmatpush1.msra.mxu0 %v177
    %215 = vmatprep.subr.mxu0 0.0
    %216 = vmatpush1.msra.mxu0 %v178
    %217 = vmatprep.subr.mxu0 0.0
    %218 = vmatpush1.msra.mxu0 %v179
    %219 = vmatprep.subr.mxu0 0.0
    %220 = vmatpush1.msra.mxu0 0.0
    %221 = vmatprep.subr.mxu0 0.0
    %222 = vmatpush1.msra.mxu0 0.0
    %223 = vmatprep.subr.mxu0 0.0
    %224 = vmatpush1.msra.mxu0 0.0
    %225 = vmatprep.subr.mxu0 0.0
    %226 = vmatpush1.msra.mxu0 0.0
    %227 = vmatprep.subr.mxu0 0.0
    %228 = vmatpush1.msra.mxu0 0.0
    %229 = vmatprep.subr.mxu0 0.0
    %230 = vmatpush1.msra.mxu0 0.0
    %231 = vmatprep.subr.mxu0 0.0
    %232 = vmatpush1.msra.mxu0 0.0
    %233 = vmatprep.subr.mxu0 0.0
    %234 = vmatpush1.msra.mxu0 0.0
    %235 = vmatprep.subr.mxu0 0.0
    %236 = vmatpush1.msra.mxu0 0.0
    %237 = vmatprep.subr.mxu0 0.0
    %238 = vmatpush1.msra.mxu0 0.0
    %239 = vmatprep.subr.mxu0 0.0
    %240 = vmatpush1.msra.mxu0 0.0
    %241 = vmatprep.subr.mxu0 0.0
    %242 = vmatpush1.msra.mxu0 0.0
    %243 = vmatprep.subr.mxu0 0.0
    %244 = vmatpush1.msra.mxu0 0.0
    %245 = vmatprep.subr.mxu0 0.0
    %246 = vmatpush1.msra.mxu0 0.0
    %247 = vmatprep.subr.mxu0 0.0
    %248 = vmatpush1.msra.mxu0 0.0
    %249 = vmatprep.subr.mxu0 0.0
    %250 = vmatpush1.msra.mxu0 0.0
    %251 = vmatprep.mubr.f32.mxu0 0.0
    %252 = vmatmul.mubr.f32.gmra.mrb[0].mxu0 %v163
    %v253 = vpop.f32.mrb[0].mxu0
    %v254 = vadd.f32 %v185, %v253
    %v255 = vpop.f32.mrb[0].mxu0
    %256 = vdwg.mxu0
    %vm257 = vcmp.ge.f32.partialorder %v254, 0.0
    %v258 = vmul.f32 %v254, 0.01
    %v259 = vsel %vm257, %v254, %v258
    %v260 = vld [vmem:[#allocation6] sm:$0xff]
    %v261 = vld [vmem:[#allocation6 + $0x8] sm:$0xff]
    %v262 = vld [vmem:[#allocation6 + $0x10] sm:$0xff]
    %v263 = vld [vmem:[#allocation6 + $0x18] sm:$0xff]
    %v264 = vld [vmem:[#allocation6 + $0x20] sm:$0xff]
    %v265 = vld [vmem:[#allocation6 + $0x28] sm:$0xff]
    %v266 = vld [vmem:[#allocation6 + $0x30] sm:$0xff]
    %v267 = vld [vmem:[#allocation6 + $0x38] sm:$0xff]
    %v268 = vld [vmem:[#allocation6 + $0x40] sm:$0xff]
    %v269 = vld [vmem:[#allocation6 + $0x48] sm:$0xff]
    %v270 = vld [vmem:[#allocation6 + $0x50] sm:$0xff]
    %v271 = vld [vmem:[#allocation6 + $0x58] sm:$0xff]
    %v272 = vld [vmem:[#allocation6 + $0x60] sm:$0xff]
    %v273 = vld [vmem:[#allocation6 + $0x68] sm:$0xff]
    %v274 = vld [vmem:[#allocation6 + $0x70] sm:$0xff]
    %v275 = vld [vmem:[#allocation6 + $0x78] sm:$0xff]
    %v276 = vld [vmem:[%s6] sm:$0x1]
    %v278 = vlaneseq
    %v279 = vshrl.u32 %v278, 7
    %v280 = vsub.s32 0, %v279
    %v281 = vrot.slane %v276, %v280
    %283 = vmatprep.subr.mxu0 0.0
    %284 = vmatpush1.msra.mxu0 %v260
    %285 = vmatprep.subr.mxu0 0.0
    %286 = vmatpush1.msra.mxu0 %v261
    %287 = vmatprep.subr.mxu0 0.0
    %288 = vmatpush1.msra.mxu0 %v262
    %289 = vmatprep.subr.mxu0 0.0
    %290 = vmatpush1.msra.mxu0 %v263
    %291 = vmatprep.subr.mxu0 0.0
    %292 = vmatpush1.msra.mxu0 %v264
    %293 = vmatprep.subr.mxu0 0.0
    %294 = vmatpush1.msra.mxu0 %v265
    %295 = vmatprep.subr.mxu0 0.0
    %296 = vmatpush1.msra.mxu0 %v266
    %297 = vmatprep.subr.mxu0 0.0
    %298 = vmatpush1.msra.mxu0 %v267
    %299 = vmatprep.subr.mxu0 0.0
    %300 = vmatpush1.msra.mxu0 %v268
    %301 = vmatprep.subr.mxu0 0.0
    %302 = vmatpush1.msra.mxu0 %v269
    %303 = vmatprep.subr.mxu0 0.0
    %304 = vmatpush1.msra.mxu0 %v270
    %305 = vmatprep.subr.mxu0 0.0
    %306 = vmatpush1.msra.mxu0 %v271
    %307 = vmatprep.subr.mxu0 0.0
    %308 = vmatpush1.msra.mxu0 %v272
    %309 = vmatprep.subr.mxu0 0.0
    %310 = vmatpush1.msra.mxu0 %v273
    %311 = vmatprep.subr.mxu0 0.0
    %312 = vmatpush1.msra.mxu0 %v274
    %313 = vmatprep.subr.mxu0 0.0
    %314 = vmatpush1.msra.mxu0 %v275
    %315 = vmatprep.subr.mxu0 0.0
    %316 = vmatpush1.msra.mxu0 0.0
    %317 = vmatprep.subr.mxu0 0.0
    %318 = vmatpush1.msra.mxu0 0.0
    %319 = vmatprep.subr.mxu0 0.0
    %320 = vmatpush1.msra.mxu0 0.0
    %321 = vmatprep.subr.mxu0 0.0
    %322 = vmatpush1.msra.mxu0 0.0
    %323 = vmatprep.subr.mxu0 0.0
    %324 = vmatpush1.msra.mxu0 0.0
    %325 = vmatprep.subr.mxu0 0.0
    %326 = vmatpush1.msra.mxu0 0.0
    %327 = vmatprep.subr.mxu0 0.0
    %328 = vmatpush1.msra.mxu0 0.0
    %329 = vmatprep.subr.mxu0 0.0
    %330 = vmatpush1.msra.mxu0 0.0
    %331 = vmatprep.subr.mxu0 0.0
    %332 = vmatpush1.msra.mxu0 0.0
    %333 = vmatprep.subr.mxu0 0.0
    %334 = vmatpush1.msra.mxu0 0.0
    %335 = vmatprep.subr.mxu0 0.0
    %336 = vmatpush1.msra.mxu0 0.0
    %337 = vmatprep.subr.mxu0 0.0
    %338 = vmatpush1.msra.mxu0 0.0
    %339 = vmatprep.subr.mxu0 0.0
    %340 = vmatpush1.msra.mxu0 0.0
    %341 = vmatprep.subr.mxu0 0.0
    %342 = vmatpush1.msra.mxu0 0.0
    %343 = vmatprep.subr.mxu0 0.0
    %344 = vmatpush1.msra.mxu0 0.0
    %345 = vmatprep.subr.mxu0 0.0
    %346 = vmatpush1.msra.mxu0 0.0
    %347 = vmatprep.mubr.f32.mxu0 0.0
    %348 = vmatmul.mubr.f32.gmra.mrb[0].mxu0 %v259
    %v349 = vpop.f32.mrb[0].mxu0
    %v350 = vadd.f32 %v281, %v349
    %v351 = vpop.f32.mrb[0].mxu0
    %352 = vdwg.mxu0
    %353 = vst [vmem:[%s7] sm:$0xff] %v350
    // Predicated region
    $region42: #{_mlp_forward.1} parent=1 // pred_check
      _
    $region43: #{_mlp_forward.1} parent=1 // pred_check_branch
      %355 = sbr.rel (0) target = $region45
    $region44: #{_mlp_forward.1} parent=1 // pred_region
      _
    $region45: #{_mlp_forward.1} parent=1 // pred_fallthru
      _
    // Predicated region
    $region46: #{_mlp_forward.1} parent=1 // pred_check
      _
    $region47: #{_mlp_forward.1} parent=1 // pred_check_branch
      %357 = sbr.rel (0) target = $region49
    $region48: #{_mlp_forward.1} parent=1 // pred_region
      _
    $region49: #{_mlp_forward.1} parent=1 // pred_fallthru
      _
    %358 = vsyncpa [#allocation3], 1
    %359 = vsyncpa [#allocation5], 1

</llo_original>
